<compile_context>
chip_gen: v7x
topology: tpu7x:2x2x1
jax: 0.10.0
libtpu: 0.0.40
codegen_flags: <defaults>
</compile_context>

<pallas_src>
import jax
import jax.numpy as jnp
from jax.experimental import pallas as pl
from jax.experimental.pallas import tpu as pltpu

IN_F = 30
HID_F = 128
OUT_F = 30
TAU = 2.0

DEFAULT_TILE_B = 4096   # batch rows per grid step


def _round_up(n, m):
    return ((n + m - 1) // m) * m


def _cdiv(a, b):
    return -(-a // b)


def snn_kernel(x_ref, w1_ref, t1_ref, w2_ref, t2_ref, out_ref):
    # Linear(30 -> 128).  Bias is folded into the per-column threshold row:
    #   (h + b) / tau >= thr   <=>   h >= thr*tau - b
    h1 = jnp.dot(x_ref[...], w1_ref[...], preferred_element_type=jnp.float32)
    s1 = (h1 >= t1_ref[...]).astype(jnp.float32)          # (tb, 128) spikes

    # Linear(128 -> 30), second LIF layer, store spikes directly (tb, 30).
    h2 = jnp.dot(s1, w2_ref[...], preferred_element_type=jnp.float32)
    out_ref[...] = (h2 >= t2_ref[...]).astype(out_ref.dtype)


def snn_forward(x, snn_threshold, w1, b1, w2, b2, *, tile_b=DEFAULT_TILE_B):
    """x: (B, 30) float32 ; returns spikes (B, 30) float32."""
    B = x.shape[0]

    # Tile sizing: <8 rows of padding per tile even for unlucky B.
    ntiles = _cdiv(B, tile_b)
    tb = _round_up(_cdiv(B, ntiles), 8)
    b_pad = ntiles * tb

    x_in = x if b_pad == B else jnp.pad(x, ((0, b_pad - B), (0, 0)))

    # Effective per-column thresholds: thr*tau - bias  (1/tau fold exact, tau=2).
    thr_eff = jnp.float32(snn_threshold) * jnp.float32(TAU)
    t1 = (thr_eff - b1.reshape(1, HID_F)).astype(jnp.float32)
    t2 = (thr_eff - b2.reshape(1, OUT_F)).astype(jnp.float32)

    out = pl.pallas_call(
        snn_kernel,
        out_shape=jax.ShapeDtypeStruct((b_pad, OUT_F), jnp.float32),
        grid=(ntiles,),
        in_specs=[
            pl.BlockSpec((tb, IN_F), lambda i: (i, 0)),        # x batch tile
            pl.BlockSpec((IN_F, HID_F), lambda i: (0, 0)),     # w1 (resident)
            pl.BlockSpec((1, HID_F), lambda i: (0, 0)),        # thr*tau - b1
            pl.BlockSpec((HID_F, OUT_F), lambda i: (0, 0)),    # w2 (resident)
            pl.BlockSpec((1, OUT_F), lambda i: (0, 0)),        # thr*tau - b2
        ],
        out_specs=pl.BlockSpec((tb, OUT_F), lambda i: (i, 0)),
        compiler_params=pltpu.CompilerParams(
            dimension_semantics=("parallel",)),
    )(x_in, w1.astype(jnp.float32), t1, w2.astype(jnp.float32), t2)

    return out if b_pad == B else out[:B]


def init_params(key):
    """Deterministic init mirroring nn.Linear defaults: U(-1/sqrt(fan_in), +)."""
    k1, k2, k3, k4 = jax.random.split(key, 4)
    bound1 = 1.0 / (IN_F ** 0.5)
    bound2 = 1.0 / (HID_F ** 0.5)
    # stored as (in, out), i.e. already transposed vs torch's (out, in)
    w1 = jax.random.uniform(k1, (IN_F, HID_F), jnp.float32, -bound1, bound1)
    b1 = jax.random.uniform(k2, (1, HID_F), jnp.float32, -bound1, bound1)
    w2 = jax.random.uniform(k3, (HID_F, OUT_F), jnp.float32, -bound2, bound2)
    b2 = jax.random.uniform(k4, (1, OUT_F), jnp.float32, -bound2, bound2)
    return w1, b1, w2, b2


def snn_reference(x, thr, w1, b1, w2, b2):
    h1 = x @ w1 + b1
    s1 = ((h1 / TAU) >= thr).astype(jnp.float32)
    h2 = s1 @ w2 + b2
    s2 = ((h2 / TAU) >= thr).astype(jnp.float32)
    return s2


if __name__ == "__main__":
    key = jax.random.PRNGKey(0)
    kp, kx = jax.random.split(key)
    w1, b1, w2, b2 = init_params(kp)
    snn_threshold = 0.8

    # Tile-aligned batch (no pad / no slice path).
    B = 8
    x = jax.random.normal(kx, (B, IN_F), dtype=jnp.float32)
    out = jax.block_until_ready(snn_forward(x, snn_threshold, w1, b1, w2, b2))
    ref = snn_reference(x, snn_threshold, w1, b1, w2, b2)
    assert out.shape == (B, OUT_F)
    assert jnp.array_equal(out, ref), "mismatch vs pure-JAX reference (B=8)"

    # Non-aligned batch (exercises the <8-row tail padding + slice path).
    B2 = 13
    x2 = jax.random.normal(jax.random.PRNGKey(1), (B2, IN_F), dtype=jnp.float32)
    out2 = jax.block_until_ready(snn_forward(x2, snn_threshold, w1, b1, w2, b2))
    ref2 = snn_reference(x2, snn_threshold, w1, b1, w2, b2)
    assert out2.shape == (B2, OUT_F)
    assert jnp.array_equal(out2, ref2), "mismatch vs pure-JAX reference (B=13)"

    print("KERNEL_OK")
</pallas_src>

<mosaic_0001>
module attributes {stable_mosaic.version = 11 : i64} {
  func.func @snn_kernel(%arg0: i32, %arg1: memref<8x30xf32, #tpu.memory_space<vmem>>, %arg2: memref<30x128xf32, #tpu.memory_space<vmem>>, %arg3: memref<1x128xf32, #tpu.memory_space<vmem>>, %arg4: memref<128x30xf32, #tpu.memory_space<vmem>>, %arg5: memref<1x30xf32, #tpu.memory_space<vmem>>, %arg6: memref<8x30xf32, #tpu.memory_space<vmem>>) attributes {dimension_semantics = [#tpu.dimension_semantics<parallel>], iteration_bounds = array<i64: 1>, scalar_prefetch = 0 : i64, scratch_operands = 0 : i64, tpu.core_type = #tpu.core_type<tc>, window_params = [{transform_indices = @transform_0, window_bounds = array<i64: 8, 30>}, {pipeline_mode = #tpu.pipeline_mode<synchronous>, transform_indices = @transform_1, window_bounds = array<i64: 30, 128>}, {pipeline_mode = #tpu.pipeline_mode<synchronous>, transform_indices = @transform_2, window_bounds = array<i64: 1, 128>}, {pipeline_mode = #tpu.pipeline_mode<synchronous>, transform_indices = @transform_3, window_bounds = array<i64: 128, 30>}, {pipeline_mode = #tpu.pipeline_mode<synchronous>, transform_indices = @transform_4, window_bounds = array<i64: 1, 30>}, {transform_indices = @transform_5, window_bounds = array<i64: 8, 30>}]} {
    %c0 = arith.constant 0 : index
    %c0_0 = arith.constant 0 : index
    %0 = vector.load %arg1[%c0, %c0_0] : memref<8x30xf32, #tpu.memory_space<vmem>>, vector<8x30xf32>
    %c0_1 = arith.constant 0 : index
    %c0_2 = arith.constant 0 : index
    %1 = vector.load %arg2[%c0_1, %c0_2] : memref<30x128xf32, #tpu.memory_space<vmem>>, vector<30x128xf32>
    %cst = arith.constant dense<0.000000e+00> : vector<8x128xf32>
    %2 = tpu.matmul %0, %1, %cst {dimension_numbers = #tpu.dot_dimension_numbers<[1], [0], [0], [1], [0, 0, 1, 1], [], []>} : vector<8x30xf32>, vector<30x128xf32>, vector<8x128xf32> -> vector<8x128xf32>
    %c0_3 = arith.constant 0 : index
    %c0_4 = arith.constant 0 : index
    %3 = vector.load %arg3[%c0_3, %c0_4] : memref<1x128xf32, #tpu.memory_space<vmem>>, vector<1x128xf32>
    %4 = vector.broadcast %3 : vector<1x128xf32> to vector<8x128xf32>
    %5 = arith.cmpf oge, %2, %4 : vector<8x128xf32>
    %6 = arith.extui %5 : vector<8x128xi1> to vector<8x128xi32>
    %7 = arith.sitofp %6 : vector<8x128xi32> to vector<8x128xf32>
    %c0_5 = arith.constant 0 : index
    %c0_6 = arith.constant 0 : index
    %8 = vector.load %arg4[%c0_5, %c0_6] : memref<128x30xf32, #tpu.memory_space<vmem>>, vector<128x30xf32>
    %cst_7 = arith.constant dense<0.000000e+00> : vector<8x30xf32>
    %9 = tpu.matmul %7, %8, %cst_7 {dimension_numbers = #tpu.dot_dimension_numbers<[1], [0], [0], [1], [0, 0, 1, 1], [], []>} : vector<8x128xf32>, vector<128x30xf32>, vector<8x30xf32> -> vector<8x30xf32>
    %c0_8 = arith.constant 0 : index
    %c0_9 = arith.constant 0 : index
    %10 = vector.load %arg5[%c0_8, %c0_9] : memref<1x30xf32, #tpu.memory_space<vmem>>, vector<1x30xf32>
    %11 = vector.broadcast %10 : vector<1x30xf32> to vector<8x30xf32>
    %12 = arith.cmpf oge, %9, %11 : vector<8x30xf32>
    %13 = arith.extui %12 : vector<8x30xi1> to vector<8x30xi32>
    %14 = arith.sitofp %13 : vector<8x30xi32> to vector<8x30xf32>
    %c0_10 = arith.constant 0 : index
    %c0_11 = arith.constant 0 : index
    %15 = vector.load %arg6[%c0_10, %c0_11] : memref<8x30xf32, #tpu.memory_space<vmem>>, vector<8x30xf32>
    tpu.vector_store %arg6[%c0_10, %c0_11], %14 {strides = array<i32>} : memref<8x30xf32, #tpu.memory_space<vmem>>, vector<8x30xf32>,
    return
  }
  func.func @transform_0(%arg0: i32) -> (i32, i32) {
    %c0_i32 = arith.constant 0 : i32
    %c0_i32_0 = arith.constant 0 : i32
    return %arg0, %c0_i32 : i32, i32
  }
  func.func @transform_1(%arg0: i32) -> (i32, i32) {
    %c0_i32 = arith.constant 0 : i32
    %c0_i32_0 = arith.constant 0 : i32
    %c0_i32_1 = arith.constant 0 : i32
    return %c0_i32, %c0_i32_0 : i32, i32
  }
  func.func @transform_2(%arg0: i32) -> (i32, i32) {
    %c0_i32 = arith.constant 0 : i32
    %c0_i32_0 = arith.constant 0 : i32
    %c0_i32_1 = arith.constant 0 : i32
    return %c0_i32, %c0_i32_0 : i32, i32
  }
  func.func @transform_3(%arg0: i32) -> (i32, i32) {
    %c0_i32 = arith.constant 0 : i32
    %c0_i32_0 = arith.constant 0 : i32
    %c0_i32_1 = arith.constant 0 : i32
    return %c0_i32, %c0_i32_0 : i32, i32
  }
  func.func @transform_4(%arg0: i32) -> (i32, i32) {
    %c0_i32 = arith.constant 0 : i32
    %c0_i32_0 = arith.constant 0 : i32
    %c0_i32_1 = arith.constant 0 : i32
    return %c0_i32, %c0_i32_0 : i32, i32
  }
  func.func @transform_5(%arg0: i32) -> (i32, i32) {
    %c0_i32 = arith.constant 0 : i32
    %c0_i32_0 = arith.constant 0 : i32
    return %arg0, %c0_i32 : i32, i32
  }
}

</mosaic_0001>

<llo_original>
// kernel: tpu_custom_call.1
$region0: #{tpu_custom_call.1}
  #allocation0 [shape = 'u32[]', space=smem, size = 0x4, offset = 0x4, fixed_abs, tag = 'smem constant byte address 0x4 - core index']
  #allocation1 [shape = 'u32[144,128]{1,0:T(1,128)}', space=vmem, size = 0x12000, scoped, tag = 'internal scratch']
  %s0 = inlined_call_operand.vmem [shape: f32[8,30], index: 0, kind: input, shape index: {}]
  %s1 = inlined_call_operand.vmem [shape: f32[30,128], index: 1, kind: input, shape index: {}]
  %s2 = inlined_call_operand.vmem [shape: f32[1,128], index: 2, kind: input, shape index: {}]
  %s3 = inlined_call_operand.vmem [shape: f32[128,30], index: 3, kind: input, shape index: {}]
  %s4 = inlined_call_operand.vmem [shape: f32[1,30], index: 4, kind: input, shape index: {}]
  %s5 = inlined_call_operand.hbm [shape: f32[8,30], index: 5, kind: output, shape index: {}]
  %s6 = sld [smem:[#allocation0]]
  $region30: #{tpu_custom_call.1} parent=0
    _
  %s8 = ssub.s32 1, %s6
  %s9 = scalar_select 0, %s8, %s6
  $region1: #{tpu_custom_call.1} parent=0
    #allocation2 [shape = 'u8[4096]{0}', space=vmem, size = 0x1000, scoped, tag = 'output window, operand 0, single buffered']
    #allocation3 [shape = 's32[1]{0}', space=sflag, size = 0x4, scoped, tag = 'scoped memory for tpu_custom_call.1']
    %10 = vsyncpa [#allocation3], 0
    // Predicated region
    $region2: #{tpu_custom_call.1} parent=1 // pred_check
      _
    $region3: #{tpu_custom_call.1} parent=1 // pred_check_branch
      %12 = sbr.rel (0) target = $region5
    $region4: #{tpu_custom_call.1} parent=1 // pred_region
      _
    $region5: #{tpu_custom_call.1} parent=1 // pred_fallthru
      _
    // Predicated region
    $region6: #{tpu_custom_call.1} parent=1 // pred_check
      _
    $region7: #{tpu_custom_call.1} parent=1 // pred_check_branch
      %14 = sbr.rel (0) target = $region9
    $region8: #{tpu_custom_call.1} parent=1 // pred_region
      _
    $region9: #{tpu_custom_call.1} parent=1 // pred_fallthru
      _
    // Predicated region
    $region10: #{tpu_custom_call.1} parent=1 // pred_check
      _
    $region11: #{tpu_custom_call.1} parent=1 // pred_check_branch
      %16 = sbr.rel (0) target = $region13
    $region12: #{tpu_custom_call.1} parent=1 // pred_region
      _
    $region13: #{tpu_custom_call.1} parent=1 // pred_fallthru
      _
    // Predicated region
    $region14: #{tpu_custom_call.1} parent=1 // pred_check
      _
    $region15: #{tpu_custom_call.1} parent=1 // pred_check_branch
      %18 = sbr.rel (0) target = $region17
    $region16: #{tpu_custom_call.1} parent=1 // pred_region
      _
    $region17: #{tpu_custom_call.1} parent=1 // pred_fallthru
      _
    // Predicated region
    $region18: #{tpu_custom_call.1} parent=1 // pred_check
      _
    $region19: #{tpu_custom_call.1} parent=1 // pred_check_branch
      %20 = sbr.rel (0) target = $region21
    $region20: #{tpu_custom_call.1} parent=1 // pred_region
      _
    $region21: #{tpu_custom_call.1} parent=1 // pred_fallthru
      _
    %v21 = vld [vmem:[%s0] sm:$0xff]
    %v22 = vld [vmem:[%s1] sm:$0xff]
    %v23 = vld [vmem:[%s1 + $0x8] sm:$0xff]
    %v24 = vld [vmem:[%s1 + $0x10] sm:$0xff]
    %v25 = vld [vmem:[%s1 + $0x18] sm:$0x3f]
    %vm26 = vcmask 244736
    %v28 = vsel %vm26, %v21, 0
    %vm30 = vcmask 1045504
    %v32 = vsel %vm30, %v25, 0
    %34 = vmatprep.subr.mxu0 0.0
    %35 = vmatpush1.msra.mxu0 %v22
    %36 = vmatprep.subr.mxu0 0.0
    %37 = vmatpush1.msra.mxu0 %v23
    %38 = vmatprep.subr.mxu0 0.0
    %39 = vmatpush1.msra.mxu0 %v24
    %40 = vmatprep.subr.mxu0 0.0
    %41 = vmatpush1.msra.mxu0 %v32
    %42 = vmatprep.subr.mxu0 0.0
    %43 = vmatpush1.msra.mxu0 0.0
    %44 = vmatprep.subr.mxu0 0.0
    %45 = vmatpush1.msra.mxu0 0.0
    %46 = vmatprep.subr.mxu0 0.0
    %47 = vmatpush1.msra.mxu0 0.0
    %48 = vmatprep.subr.mxu0 0.0
    %49 = vmatpush1.msra.mxu0 0.0
    %50 = vmatprep.subr.mxu0 0.0
    %51 = vmatpush1.msra.mxu0 0.0
    %52 = vmatprep.subr.mxu0 0.0
    %53 = vmatpush1.msra.mxu0 0.0
    %54 = vmatprep.subr.mxu0 0.0
    %55 = vmatpush1.msra.mxu0 0.0
    %56 = vmatprep.subr.mxu0 0.0
    %57 = vmatpush1.msra.mxu0 0.0
    %58 = vmatprep.subr.mxu0 0.0
    %59 = vmatpush1.msra.mxu0 0.0
    %60 = vmatprep.subr.mxu0 0.0
    %61 = vmatpush1.msra.mxu0 0.0
    %62 = vmatprep.subr.mxu0 0.0
    %63 = vmatpush1.msra.mxu0 0.0
    %64 = vmatprep.subr.mxu0 0.0
    %65 = vmatpush1.msra.mxu0 0.0
    %66 = vmatprep.subr.mxu0 0.0
    %67 = vmatpush1.msra.mxu0 0.0
    %68 = vmatprep.subr.mxu0 0.0
    %69 = vmatpush1.msra.mxu0 0.0
    %70 = vmatprep.subr.mxu0 0.0
    %71 = vmatpush1.msra.mxu0 0.0
    %72 = vmatprep.subr.mxu0 0.0
    %73 = vmatpush1.msra.mxu0 0.0
    %74 = vmatprep.subr.mxu0 0.0
    %75 = vmatpush1.msra.mxu0 0.0
    %76 = vmatprep.subr.mxu0 0.0
    %77 = vmatpush1.msra.mxu0 0.0
    %78 = vmatprep.subr.mxu0 0.0
    %79 = vmatpush1.msra.mxu0 0.0
    %80 = vmatprep.subr.mxu0 0.0
    %81 = vmatpush1.msra.mxu0 0.0
    %82 = vmatprep.subr.mxu0 0.0
    %83 = vmatpush1.msra.mxu0 0.0
    %84 = vmatprep.subr.mxu0 0.0
    %85 = vmatpush1.msra.mxu0 0.0
    %86 = vmatprep.subr.mxu0 0.0
    %87 = vmatpush1.msra.mxu0 0.0
    %88 = vmatprep.subr.mxu0 0.0
    %89 = vmatpush1.msra.mxu0 0.0
    %90 = vmatprep.subr.mxu0 0.0
    %91 = vmatpush1.msra.mxu0 0.0
    %92 = vmatprep.subr.mxu0 0.0
    %93 = vmatpush1.msra.mxu0 0.0
    %94 = vmatprep.subr.mxu0 0.0
    %95 = vmatpush1.msra.mxu0 0.0
    %96 = vmatprep.subr.mxu0 0.0
    %97 = vmatpush1.msra.mxu0 0.0
    %98 = vmatprep.mubr.f32.mxu0 0.0
    %99 = vmatmul.mubr.f32.gmra.mrb[0].mxu0 %v28
    %v100 = vpop.f32.mrb[0].mxu0
    %v101 = vadd.f32 0.0, %v100
    %v102 = vpop.f32.mrb[0].mxu0
    %103 = vdwg.mxu0
    %v104 = vld [vmem:[%s2] sm:$0x1]
    %v106 = vlaneseq
    %v107 = vshrl.u32 %v106, 7
    %v108 = vsub.s32 0, %v107
    %v109 = vrot.slane %v104, %v108
    %vm111 = vcmp.ge.f32.partialorder %v101, %v109
    %v112 = vsel %vm111, 1, 0
    %v113 = vcvt.s32.f32 %v112
    %v114 = vld [vmem:[%s3] sm:$0xff]
    %v115 = vld [vmem:[%s3 + $0x8] sm:$0xff]
    %v116 = vld [vmem:[%s3 + $0x10] sm:$0xff]
    %v117 = vld [vmem:[%s3 + $0x18] sm:$0xff]
    %v118 = vld [vmem:[%s3 + $0x20] sm:$0xff]
    %v119 = vld [vmem:[%s3 + $0x28] sm:$0xff]
    %v120 = vld [vmem:[%s3 + $0x30] sm:$0xff]
    %v121 = vld [vmem:[%s3 + $0x38] sm:$0xff]
    %v122 = vld [vmem:[%s3 + $0x40] sm:$0xff]
    %v123 = vld [vmem:[%s3 + $0x48] sm:$0xff]
    %v124 = vld [vmem:[%s3 + $0x50] sm:$0xff]
    %v125 = vld [vmem:[%s3 + $0x58] sm:$0xff]
    %v126 = vld [vmem:[%s3 + $0x60] sm:$0xff]
    %v127 = vld [vmem:[%s3 + $0x68] sm:$0xff]
    %v128 = vld [vmem:[%s3 + $0x70] sm:$0xff]
    %v129 = vld [vmem:[%s3 + $0x78] sm:$0xff]
    %130 = vmatprep.subr.mxu0 0.0
    %131 = vmatpush1.msra.mxu0 %v114
    %132 = vmatprep.subr.mxu0 0.0
    %133 = vmatpush1.msra.mxu0 %v115
    %134 = vmatprep.subr.mxu0 0.0
    %135 = vmatpush1.msra.mxu0 %v116
    %136 = vmatprep.subr.mxu0 0.0
    %137 = vmatpush1.msra.mxu0 %v117
    %138 = vmatprep.subr.mxu0 0.0
    %139 = vmatpush1.msra.mxu0 %v118
    %140 = vmatprep.subr.mxu0 0.0
    %141 = vmatpush1.msra.mxu0 %v119
    %142 = vmatprep.subr.mxu0 0.0
    %143 = vmatpush1.msra.mxu0 %v120
    %144 = vmatprep.subr.mxu0 0.0
    %145 = vmatpush1.msra.mxu0 %v121
    %146 = vmatprep.subr.mxu0 0.0
    %147 = vmatpush1.msra.mxu0 %v122
    %148 = vmatprep.subr.mxu0 0.0
    %149 = vmatpush1.msra.mxu0 %v123
    %150 = vmatprep.subr.mxu0 0.0
    %151 = vmatpush1.msra.mxu0 %v124
    %152 = vmatprep.subr.mxu0 0.0
    %153 = vmatpush1.msra.mxu0 %v125
    %154 = vmatprep.subr.mxu0 0.0
    %155 = vmatpush1.msra.mxu0 %v126
    %156 = vmatprep.subr.mxu0 0.0
    %157 = vmatpush1.msra.mxu0 %v127
    %158 = vmatprep.subr.mxu0 0.0
    %159 = vmatpush1.msra.mxu0 %v128
    %160 = vmatprep.subr.mxu0 0.0
    %161 = vmatpush1.msra.mxu0 %v129
    %162 = vmatprep.subr.mxu0 0.0
    %163 = vmatpush1.msra.mxu0 0.0
    %164 = vmatprep.subr.mxu0 0.0
    %165 = vmatpush1.msra.mxu0 0.0
    %166 = vmatprep.subr.mxu0 0.0
    %167 = vmatpush1.msra.mxu0 0.0
    %168 = vmatprep.subr.mxu0 0.0
    %169 = vmatpush1.msra.mxu0 0.0
    %170 = vmatprep.subr.mxu0 0.0
    %171 = vmatpush1.msra.mxu0 0.0
    %172 = vmatprep.subr.mxu0 0.0
    %173 = vmatpush1.msra.mxu0 0.0
    %174 = vmatprep.subr.mxu0 0.0
    %175 = vmatpush1.msra.mxu0 0.0
    %176 = vmatprep.subr.mxu0 0.0
    %177 = vmatpush1.msra.mxu0 0.0
    %178 = vmatprep.subr.mxu0 0.0
    %179 = vmatpush1.msra.mxu0 0.0
    %180 = vmatprep.subr.mxu0 0.0
    %181 = vmatpush1.msra.mxu0 0.0
    %182 = vmatprep.subr.mxu0 0.0
    %183 = vmatpush1.msra.mxu0 0.0
    %184 = vmatprep.subr.mxu0 0.0
    %185 = vmatpush1.msra.mxu0 0.0
    %186 = vmatprep.subr.mxu0 0.0
    %187 = vmatpush1.msra.mxu0 0.0
    %188 = vmatprep.subr.mxu0 0.0
    %189 = vmatpush1.msra.mxu0 0.0
    %190 = vmatprep.subr.mxu0 0.0
    %191 = vmatpush1.msra.mxu0 0.0
    %192 = vmatprep.subr.mxu0 0.0
    %193 = vmatpush1.msra.mxu0 0.0
    %194 = vmatprep.mubr.f32.mxu0 0.0
    %195 = vmatmul.mubr.f32.gmra.mrb[0].mxu0 %v113
    %v196 = vpop.f32.mrb[0].mxu0
    %v197 = vadd.f32 0.0, %v196
    %v198 = vpop.f32.mrb[0].mxu0
    %199 = vdwg.mxu0
    %v200 = vld [vmem:[%s4] sm:$0x1]
    %v202 = vlaneseq
    %v203 = vshrl.u32 %v202, 7
    %v204 = vsub.s32 0, %v203
    %v205 = vrot.slane %v200, %v204
    %vm207 = vcmp.ge.f32.partialorder %v197, %v205
    %v208 = vsel %vm207, 1, 0
    %v209 = vcvt.s32.f32 %v208
    %210 = vst.msk [vmem:[#allocation2] sm:$0xff] %vm26, %v209
    // Predicated region
    $region22: #{tpu_custom_call.1} parent=1 // pred_check
      _
    $region23: #{tpu_custom_call.1} parent=1 // pred_check_branch
      %212 = sbr.rel (0) target = $region25
    $region24: #{tpu_custom_call.1} parent=1 // pred_region
      %s214 = ssub.s32 128, 128
      %215 = vsyncadd [#allocation3], %s214
      %s217 = sshll.u32 [#allocation2], 4
      %s218 = int_to_ptr.vmem [resolvable:$true] %s217
      %220 = dma.vmem_to_hbm [thread:$0]  %s218, 128, %s5, [#allocation3]
    $region25: #{tpu_custom_call.1} parent=1 // pred_fallthru
      _
    // Predicated region
    $region26: #{tpu_custom_call.1} parent=1 // pred_check
      _
    $region27: #{tpu_custom_call.1} parent=1 // pred_check_branch
      %222 = sbr.rel (0) target = $region29
    $region28: #{tpu_custom_call.1} parent=1 // pred_region
      %223 = dma.done [#allocation3], 128
    $region29: #{tpu_custom_call.1} parent=1 // pred_fallthru
      _
    %224 = vsyncpa [#allocation3], 1

</llo_original>
